<compile_context>
chip_gen: v7x
topology: tpu7x:2x2x1
jax: 0.10.0
libtpu: 0.0.40
codegen_flags: <defaults>
</compile_context>

<pallas_src>
import math
import numpy as np
import jax
import jax.numpy as jnp
from jax.experimental import pallas as pl
from jax.experimental.pallas import tpu as pltpu

_LANE_TILE = 512      # M (=OH*OW) tile, multiple of 128
_POOL_TILE_B = 256    # N*C row tile for the pooling kernel


def _round_up(v, m):
    return ((v + m - 1) // m) * m


# --------------------------- Pallas kernels ---------------------------------

def _conv_matmul_kernel(xp_ref, w_ref, o_ref):
    # xp: (1, KK*Cin, tileM) im2col tile, w: (OC, KK*Cin), o: (1, OC, tileM)
    # Single folded-contraction dot; lane dim of the output is tileM (dense).
    o_ref[0] = jnp.dot(
        w_ref[...], xp_ref[0], preferred_element_type=jnp.float32
    ).astype(o_ref.dtype)


def _separable_pool_kernel(x_ref, ph_ref, pwt_ref, o_ref):
    # x: (tileB, H, W), ph: (OH, H), pwt: (W, OW), o: (tileB, OH, OW)
    x = x_ref[...]
    tb = x.shape[0]
    # pool along W:  (b,H,W) @ (W,OW)  -> (b,H,OW)   (batched matmul)
    pwt_b = jnp.broadcast_to(pwt_ref[...], (tb,) + pwt_ref.shape)
    t = jnp.einsum('bhw,bwq->bhq', x, pwt_b,
                   preferred_element_type=jnp.float32).astype(x.dtype)
    # pool along H:  (OH,H) @ (b,H,OW) -> (b,OH,OW)  (batched matmul)
    ph_b = jnp.broadcast_to(ph_ref[...], (tb,) + ph_ref.shape)
    out = jnp.einsum('bph,bhq->bpq', ph_b, t,
                     preferred_element_type=jnp.float32)
    o_ref[...] = out.astype(o_ref.dtype)


# ------------------------------ wrappers -------------------------------------

def _adaptive_pool_matrix(in_size, out_size):
    """PyTorch AdaptiveAvgPool semantics: bin i = [floor(i*N/S), ceil((i+1)*N/S))."""
    p = np.zeros((out_size, in_size), dtype=np.float32)
    for i in range(out_size):
        s = (i * in_size) // out_size
        e = math.ceil((i + 1) * in_size / out_size)
        p[i, s:e] = 1.0 / (e - s)
    return p


def adaptive_avg_pool2d(x_nchw, out_hw, *, compute_dtype=jnp.float32):
    N, C, H, W = x_nchw.shape
    OH, OW = out_hw
    ph = jnp.asarray(_adaptive_pool_matrix(H, OH), dtype=compute_dtype)   # (OH, H)
    pwt = jnp.asarray(_adaptive_pool_matrix(W, OW).T, dtype=compute_dtype)  # (W, OW)

    B = N * C
    tile_b = min(B, _POOL_TILE_B)
    b_pad = _round_up(B, tile_b)
    xb = x_nchw.reshape(B, H, W).astype(compute_dtype)
    if b_pad != B:
        xb = jnp.pad(xb, ((0, b_pad - B), (0, 0), (0, 0)))

    out = pl.pallas_call(
        _separable_pool_kernel,
        out_shape=jax.ShapeDtypeStruct((b_pad, OH, OW), x_nchw.dtype),
        grid=(b_pad // tile_b,),
        in_specs=[
            pl.BlockSpec((tile_b, H, W), lambda i: (i, 0, 0)),
            pl.BlockSpec((OH, H), lambda i: (0, 0)),
            pl.BlockSpec((W, OW), lambda i: (0, 0)),
        ],
        out_specs=pl.BlockSpec((tile_b, OH, OW), lambda i: (i, 0, 0)),
        compiler_params=pltpu.CompilerParams(
            dimension_semantics=("parallel",)),
        cost_estimate=pl.CostEstimate(
            flops=int(2 * b_pad * (H * W * OW + OH * H * OW)),
            transcendentals=0,
            bytes_accessed=int(xb.size) * xb.dtype.itemsize
                           + int(b_pad * OH * OW) * 4
                           + int(ph.size + pwt.size) * ph.dtype.itemsize),
    )(xb, ph, pwt)
    return out[:B].reshape(N, C, OH, OW)


def _im2col(x_nchw, KH, KW):
    # (N, C, H, W) -> (N, KH*KW*C, OH*OW); row index = (kh*KW+kw)*C + c
    N, C, H, W = x_nchw.shape
    OH, OW = H - KH + 1, W - KW + 1
    taps = [x_nchw[:, :, kh:kh + OH, kw:kw + OW].reshape(N, C, OH * OW)
            for kh in range(KH) for kw in range(KW)]
    return jnp.stack(taps, axis=1).reshape(N, KH * KW * C, OH * OW)


def conv2d_valid(x_nchw, w_oihw, *, compute_dtype=jnp.float32):
    """Conv2d, stride=1, padding=0, dilation=1, groups=1, bias=False."""
    N, C, H, W = x_nchw.shape
    OC, _, KH, KW = w_oihw.shape
    OH, OW = H - KH + 1, W - KW + 1
    Mo = OH * OW
    KKC = KH * KW * C

    # TODO(synk): replace the JAX-side im2col with an in-kernel halo-tile gather
    # (manual DMA) for large H*W to avoid the KH*KW-fold HBM expansion.
    xp = _im2col(x_nchw, KH, KW).astype(compute_dtype)                  # (N, KKC, Mo)
    w2 = jnp.transpose(w_oihw, (0, 2, 3, 1)).reshape(OC, KKC).astype(compute_dtype)

    # Tile the lane (M) dimension; pad Mo up to a multiple of the tile.
    tile_m = min(_LANE_TILE, _round_up(Mo, 128))
    m_pad = _round_up(Mo, tile_m)
    if m_pad != Mo:
        xp = jnp.pad(xp, ((0, 0), (0, 0), (0, m_pad - Mo)))

    out = pl.pallas_call(
        _conv_matmul_kernel,
        out_shape=jax.ShapeDtypeStruct((N, OC, m_pad), x_nchw.dtype),
        grid=(N, m_pad // tile_m),
        in_specs=[
            pl.BlockSpec((1, KKC, tile_m), lambda n, j: (n, 0, j)),
            pl.BlockSpec((OC, KKC), lambda n, j: (0, 0)),
        ],
        out_specs=pl.BlockSpec((1, OC, tile_m), lambda n, j: (n, 0, j)),
        compiler_params=pltpu.CompilerParams(
            dimension_semantics=("parallel", "parallel")),
        cost_estimate=pl.CostEstimate(
            flops=int(2 * N * OC * m_pad * KKC),
            transcendentals=0,
            bytes_accessed=int(xp.size) * xp.dtype.itemsize
                           + int(w2.size) * w2.dtype.itemsize
                           + int(N * OC * m_pad) * 4),
    )(xp, w2)
    # already (N, OC, spatial): no trailing transpose needed.
    return out[:, :, :Mo].reshape(N, OC, OH, OW)


class FirstOctaveConvPallas:
    """Pallas port of FirstOctaveConv (stride=1, padding=0, no bias)."""

    def __init__(self, in_channels, out_channels, kernel_size, alpha=0.5,
                 stride=1, padding=0, dilation=1, groups=1, bias=False, *,
                 key, compute_dtype=jnp.float32):
        assert stride == 1 and padding == 0 and dilation == 1
        assert groups == 1 and not bias
        k = kernel_size[0]
        self.stride = stride
        self.compute_dtype = compute_dtype
        c_high = out_channels - 2 * int(alpha * out_channels)   # a2a out channels
        c_low = int(alpha * out_channels)                       # b2b / c2c out channels
        ka, kb, kc = jax.random.split(key, 3)
        bound = 1.0 / math.sqrt(in_channels * k * k)             # PyTorch-style uniform init
        self.w_a2a = jax.random.uniform(ka, (c_high, in_channels, k, k),
                                        jnp.float32, -bound, bound)
        self.w_b2b = jax.random.uniform(kb, (c_low, in_channels, k, k),
                                        jnp.float32, -bound, bound)
        self.w_c2c = jax.random.uniform(kc, (c_low, in_channels, k, k),
                                        jnp.float32, -bound, bound)

    def __call__(self, x):
        # TODO(synk): stride==2 branch of the reference calls self.h2g_pool which
        # is never defined in the PyTorch module (would raise AttributeError).
        _, _, H, W = x.shape
        cd = self.compute_dtype
        xb = adaptive_avg_pool2d(x, (int(0.75 * H), int(0.75 * W)), compute_dtype=cd)
        xc = adaptive_avg_pool2d(x, (int(0.5 * H), int(0.5 * W)), compute_dtype=cd)
        a = conv2d_valid(x, self.w_a2a, compute_dtype=cd)
        b = conv2d_valid(xb, self.w_b2b, compute_dtype=cd)
        c = conv2d_valid(xc, self.w_c2c, compute_dtype=cd)
        return a, b, c


# --------------------------------- main ---------------------------------------

if __name__ == "__main__":
    key = jax.random.PRNGKey(0)
    kx, kw = jax.random.split(key)

    N, Cin, H, W = 2, 4, 16, 16
    out_channels, ksize, alpha = 8, (3, 3), 0.25   # alpha=0.25 keeps a2a non-empty

    x = jax.random.normal(kx, (N, Cin, H, W), jnp.float32)

    # pure-JAX reference
    def ref_pool(xr, out_hw):
        ph = jnp.asarray(_adaptive_pool_matrix(xr.shape[2], out_hw[0]))
        pw = jnp.asarray(_adaptive_pool_matrix(xr.shape[3], out_hw[1]))
        return jnp.einsum('ah,bw,nchw->ncab', ph, pw, xr)

    def ref_conv(xr, wr):
        return jax.lax.conv_general_dilated(
            xr, wr, (1, 1), 'VALID', dimension_numbers=('NCHW', 'OIHW', 'NCHW'))

    # --- f32 MXU path (tight tolerance) ---
    mod = FirstOctaveConvPallas(Cin, out_channels, ksize, alpha=alpha, key=kw)
    a, b, c = mod(x)
    jax.block_until_ready((a, b, c))

    ra = ref_conv(x, mod.w_a2a)
    rb = ref_conv(ref_pool(x, (12, 12)), mod.w_b2b)
    rc = ref_conv(ref_pool(x, (8, 8)), mod.w_c2c)

    assert a.shape == (2, 4, 14, 14), a.shape
    assert b.shape == (2, 2, 10, 10), b.shape
    assert c.shape == (2, 2, 6, 6), c.shape
    np.testing.assert_allclose(np.asarray(a), np.asarray(ra), atol=1e-4, rtol=1e-4)
    np.testing.assert_allclose(np.asarray(b), np.asarray(rb), atol=1e-4, rtol=1e-4)
    np.testing.assert_allclose(np.asarray(c), np.asarray(rc), atol=1e-4, rtol=1e-4)

    # --- bf16 MXU path (perf-review recommendation; f32 accumulation) ---
    mod_bf16 = FirstOctaveConvPallas(Cin, out_channels, ksize, alpha=alpha,
                                     key=kw, compute_dtype=jnp.bfloat16)
    a16, b16, c16 = mod_bf16(x)
    jax.block_until_ready((a16, b16, c16))
    np.testing.assert_allclose(np.asarray(a16), np.asarray(ra), atol=5e-2, rtol=5e-2)
    np.testing.assert_allclose(np.asarray(b16), np.asarray(rb), atol=5e-2, rtol=5e-2)
    np.testing.assert_allclose(np.asarray(c16), np.asarray(rc), atol=5e-2, rtol=5e-2)

    print("KERNEL_OK")
</pallas_src>

<mosaic_0001>
module attributes {stable_mosaic.version = 11 : i64} {
  func.func @_separable_pool_kernel(%arg0: i32, %arg1: memref<8x16x16xf32, #tpu.memory_space<vmem>>, %arg2: memref<12x16xf32, #tpu.memory_space<vmem>>, %arg3: memref<16x12xf32, #tpu.memory_space<vmem>>, %arg4: memref<8x12x12xf32, #tpu.memory_space<vmem>>) attributes {dimension_semantics = [#tpu.dimension_semantics<parallel>], iteration_bounds = array<i64: 1>, scalar_prefetch = 0 : i64, scratch_operands = 0 : i64, tpu.core_type = #tpu.core_type<tc>, window_params = [{transform_indices = @transform_0, window_bounds = array<i64: 8, 16, 16>}, {pipeline_mode = #tpu.pipeline_mode<synchronous>, transform_indices = @transform_1, window_bounds = array<i64: 12, 16>}, {pipeline_mode = #tpu.pipeline_mode<synchronous>, transform_indices = @transform_2, window_bounds = array<i64: 16, 12>}, {transform_indices = @transform_3, window_bounds = array<i64: 8, 12, 12>}]} {
    %c0 = arith.constant 0 : index
    %c0_0 = arith.constant 0 : index
    %c0_1 = arith.constant 0 : index
    %0 = vector.load %arg1[%c0, %c0_0, %c0_1] : memref<8x16x16xf32, #tpu.memory_space<vmem>>, vector<8x16x16xf32>
    %c0_2 = arith.constant 0 : index
    %c0_3 = arith.constant 0 : index
    %1 = vector.load %arg3[%c0_2, %c0_3] : memref<16x12xf32, #tpu.memory_space<vmem>>, vector<16x12xf32>
    %2 = vector.shape_cast %1 : vector<16x12xf32> to vector<1x16x12xf32>
    %3 = vector.broadcast %2 : vector<1x16x12xf32> to vector<8x16x12xf32>
    "tpu.trace_start"() <{level = 10 : i32, message = "bhw,bwq->bhq"}> : () -> ()
    %cst = arith.constant dense<0.000000e+00> : vector<8x16x12xf32>
    %4 = tpu.matmul %0, %3, %cst {dimension_numbers = #tpu.dot_dimension_numbers<[2], [1], [1], [2], [0, 0, 0, 1, 1, 2], [0], [0]>} : vector<8x16x16xf32>, vector<8x16x12xf32>, vector<8x16x12xf32> -> vector<8x16x12xf32>
    "tpu.trace_stop"() : () -> ()
    %c0_4 = arith.constant 0 : index
    %c0_5 = arith.constant 0 : index
    %5 = vector.load %arg2[%c0_4, %c0_5] : memref<12x16xf32, #tpu.memory_space<vmem>>, vector<12x16xf32>
    %6 = vector.shape_cast %5 : vector<12x16xf32> to vector<1x12x16xf32>
    %7 = vector.broadcast %6 : vector<1x12x16xf32> to vector<8x12x16xf32>
    "tpu.trace_start"() <{level = 10 : i32, message = "bph,bhq->bpq"}> : () -> ()
    %cst_6 = arith.constant dense<0.000000e+00> : vector<8x12x12xf32>
    %8 = tpu.matmul %7, %4, %cst_6 {dimension_numbers = #tpu.dot_dimension_numbers<[2], [1], [1], [2], [0, 0, 0, 1, 1, 2], [0], [0]>} : vector<8x12x16xf32>, vector<8x16x12xf32>, vector<8x12x12xf32> -> vector<8x12x12xf32>
    "tpu.trace_stop"() : () -> ()
    %c0_7 = arith.constant 0 : index
    %c0_8 = arith.constant 0 : index
    %c0_9 = arith.constant 0 : index
    %9 = vector.load %arg4[%c0_7, %c0_8, %c0_9] : memref<8x12x12xf32, #tpu.memory_space<vmem>>, vector<8x12x12xf32>
    tpu.vector_store %arg4[%c0_7, %c0_8, %c0_9], %8 {strides = array<i32>} : memref<8x12x12xf32, #tpu.memory_space<vmem>>, vector<8x12x12xf32>,
    return
  }
  func.func @transform_0(%arg0: i32) -> (i32, i32, i32) {
    %c0_i32 = arith.constant 0 : i32
    %c0_i32_0 = arith.constant 0 : i32
    %c0_i32_1 = arith.constant 0 : i32
    return %arg0, %c0_i32, %c0_i32_0 : i32, i32, i32
  }
  func.func @transform_1(%arg0: i32) -> (i32, i32) {
    %c0_i32 = arith.constant 0 : i32
    %c0_i32_0 = arith.constant 0 : i32
    %c0_i32_1 = arith.constant 0 : i32
    return %c0_i32, %c0_i32_0 : i32, i32
  }
  func.func @transform_2(%arg0: i32) -> (i32, i32) {
    %c0_i32 = arith.constant 0 : i32
    %c0_i32_0 = arith.constant 0 : i32
    %c0_i32_1 = arith.constant 0 : i32
    return %c0_i32, %c0_i32_0 : i32, i32
  }
  func.func @transform_3(%arg0: i32) -> (i32, i32, i32) {
    %c0_i32 = arith.constant 0 : i32
    %c0_i32_0 = arith.constant 0 : i32
    %c0_i32_1 = arith.constant 0 : i32
    return %arg0, %c0_i32, %c0_i32_0 : i32, i32, i32
  }
}

</mosaic_0001>

<llo_original>
// kernel: tpu_custom_call.1
$region0: #{tpu_custom_call.1}
  #allocation0 [shape = 'u32[]', space=smem, size = 0x4, offset = 0x4, fixed_abs, tag = 'smem constant byte address 0x4 - core index']
  #allocation1 [shape = 'u32[144,128]{1,0:T(1,128)}', space=vmem, size = 0x12000, scoped, tag = 'internal scratch']
  %s0 = inlined_call_operand.hbm [shape: f32[8,16,16], index: 0, kind: input, shape index: {}]
  %s1 = inlined_call_operand.hbm [shape: f32[12,16], index: 1, kind: input, shape index: {}]
  %s2 = inlined_call_operand.hbm [shape: f32[16,12], index: 2, kind: input, shape index: {}]
  %s3 = inlined_call_operand.vmem [shape: f32[8,12,12], index: 3, kind: output, shape index: {}]
  %s4 = sld [smem:[#allocation0]]
  $region34: #{tpu_custom_call.1} parent=0
    _
  %s6 = ssub.s32 1, %s4
  %s7 = scalar_select 0, %s6, %s4
  $region1: #{tpu_custom_call.1} parent=0
    #allocation2 [shape = 'u8[65536]{0}', space=vmem, size = 0x10000, scoped, tag = 'input window, operand 0, single buffered']
    #allocation3 [shape = 's32[1]{0}', space=sflag, size = 0x4, scoped, tag = 'scoped memory for tpu_custom_call.1']
    #allocation4 [shape = 'u8[8192]{0}', space=vmem, size = 0x2000, scoped, tag = 'input window, operand 1, single buffered']
    #allocation5 [shape = 's32[1]{0}', space=sflag, size = 0x4, scoped, tag = 'scoped memory for tpu_custom_call.1']
    #allocation6 [shape = 'u8[8192]{0}', space=vmem, size = 0x2000, scoped, tag = 'input window, operand 2, single buffered']
    %8 = vsyncpa [#allocation3], 0
    %9 = vsyncpa [#allocation5], 0
    // Predicated region
    $region2: #{tpu_custom_call.1} parent=1 // pred_check
      _
    $region3: #{tpu_custom_call.1} parent=1 // pred_check_branch
      %11 = sbr.rel (0) target = $region5
    $region4: #{tpu_custom_call.1} parent=1 // pred_region
      %s13 = ssub.s32 2048, 2048
      %14 = vsyncadd [#allocation3], %s13
      %s15 = sshll.u32 [#allocation2], 4
      %s16 = int_to_ptr.vmem [resolvable:$true] %s15
      %21 = dma.hbm_to_vmem [thread:$0]  %s0, 2048, %s16, [#allocation3], 128, 128, 8
    $region5: #{tpu_custom_call.1} parent=1 // pred_fallthru
      _
    // Predicated region
    $region6: #{tpu_custom_call.1} parent=1 // pred_check
      _
    $region7: #{tpu_custom_call.1} parent=1 // pred_check_branch
      %23 = sbr.rel (0) target = $region9
    $region8: #{tpu_custom_call.1} parent=1 // pred_region
      %s25 = ssub.s32 256, 256
      %26 = vsyncadd [#allocation5], %s25
      %s27 = sshll.u32 [#allocation4], 4
      %s28 = int_to_ptr.vmem [resolvable:$true] %s27
      %33 = dma.hbm_to_vmem [thread:$0]  %s1, 256, %s28, [#allocation5], 128, 128, 8
    $region9: #{tpu_custom_call.1} parent=1 // pred_fallthru
      _
    // Predicated region
    $region10: #{tpu_custom_call.1} parent=1 // pred_check
      _
    $region11: #{tpu_custom_call.1} parent=1 // pred_check_branch
      %35 = sbr.rel (0) target = $region13
    $region12: #{tpu_custom_call.1} parent=1 // pred_region
      %s37 = ssub.s32 256, 256
      %38 = vsyncadd [#allocation5], %s37
      %s39 = sshll.u32 [#allocation6], 4
      %s40 = int_to_ptr.vmem [resolvable:$true] %s39
      %45 = dma.hbm_to_vmem [thread:$0]  %s2, 256, %s40, [#allocation5], 128, 128, 8
    $region13: #{tpu_custom_call.1} parent=1 // pred_fallthru
      _
    // Predicated region
    $region14: #{tpu_custom_call.1} parent=1 // pred_check
      _
    $region15: #{tpu_custom_call.1} parent=1 // pred_check_branch
      %47 = sbr.rel (0) target = $region17
    $region16: #{tpu_custom_call.1} parent=1 // pred_region
      %48 = dma.done [#allocation3], 2048
    $region17: #{tpu_custom_call.1} parent=1 // pred_fallthru
      _
    // Predicated region
    $region18: #{tpu_custom_call.1} parent=1 // pred_check
      _
    $region19: #{tpu_custom_call.1} parent=1 // pred_check_branch
      %50 = sbr.rel (0) target = $region21
    $region20: #{tpu_custom_call.1} parent=1 // pred_region
      %51 = dma.done [#allocation5], 256
    $region21: #{tpu_custom_call.1} parent=1 // pred_fallthru
      _
    // Predicated region
    $region22: #{tpu_custom_call.1} parent=1 // pred_check
      _
    $region23: #{tpu_custom_call.1} parent=1 // pred_check_branch
      %53 = sbr.rel (0) target = $region25
    $region24: #{tpu_custom_call.1} parent=1 // pred_region
      %54 = dma.done [#allocation5], 256
    $region25: #{tpu_custom_call.1} parent=1 // pred_fallthru
      _
    %v55 = vld [vmem:[#allocation2] sm:$0xff]
    %v56 = vld [vmem:[#allocation2 + $0x8] sm:$0xff]
    %v57 = vld [vmem:[#allocation2 + $0x10] sm:$0xff]
    %v58 = vld [vmem:[#allocation2 + $0x18] sm:$0xff]
    %v59 = vld [vmem:[#allocation2 + $0x20] sm:$0xff]
    %v60 = vld [vmem:[#allocation2 + $0x28] sm:$0xff]
    %v61 = vld [vmem:[#allocation2 + $0x30] sm:$0xff]
    %v62 = vld [vmem:[#allocation2 + $0x38] sm:$0xff]
    %v63 = vld [vmem:[#allocation2 + $0x40] sm:$0xff]
    %v64 = vld [vmem:[#allocation2 + $0x48] sm:$0xff]
    %v65 = vld [vmem:[#allocation2 + $0x50] sm:$0xff]
    %v66 = vld [vmem:[#allocation2 + $0x58] sm:$0xff]
    %v67 = vld [vmem:[#allocation2 + $0x60] sm:$0xff]
    %v68 = vld [vmem:[#allocation2 + $0x68] sm:$0xff]
    %v69 = vld [vmem:[#allocation2 + $0x70] sm:$0xff]
    %v70 = vld [vmem:[#allocation2 + $0x78] sm:$0xff]
    %v71 = vld [vmem:[#allocation6] sm:$0xff]
    %v72 = vld [vmem:[#allocation6 + $0x8] sm:$0xff]
    %vm73 = vcmask 130048
    %v75 = vsel %vm73, %v55, 0
    %v78 = vsel %vm73, %v56, 0
    %80 = vmatprep.subr.mxu0 0.0
    %81 = vmatpush1.msra.mxu0 %v71
    %82 = vmatprep.subr.mxu0 0.0
    %83 = vmatpush1.msra.mxu0 %v72
    %84 = vmatprep.subr.mxu0 0.0
    %85 = vmatpush1.msra.mxu0 0.0
    %86 = vmatprep.subr.mxu0 0.0
    %87 = vmatpush1.msra.mxu0 0.0
    %88 = vmatprep.subr.mxu0 0.0
    %89 = vmatpush1.msra.mxu0 0.0
    %90 = vmatprep.subr.mxu0 0.0
    %91 = vmatpush1.msra.mxu0 0.0
    %92 = vmatprep.subr.mxu0 0.0
    %93 = vmatpush1.msra.mxu0 0.0
    %94 = vmatprep.subr.mxu0 0.0
    %95 = vmatpush1.msra.mxu0 0.0
    %96 = vmatprep.subr.mxu0 0.0
    %97 = vmatpush1.msra.mxu0 0.0
    %98 = vmatprep.subr.mxu0 0.0
    %99 = vmatpush1.msra.mxu0 0.0
    %100 = vmatprep.subr.mxu0 0.0
    %101 = vmatpush1.msra.mxu0 0.0
    %102 = vmatprep.subr.mxu0 0.0
    %103 = vmatpush1.msra.mxu0 0.0
    %104 = vmatprep.subr.mxu0 0.0
    %105 = vmatpush1.msra.mxu0 0.0
    %106 = vmatprep.subr.mxu0 0.0
    %107 = vmatpush1.msra.mxu0 0.0
    %108 = vmatprep.subr.mxu0 0.0
    %109 = vmatpush1.msra.mxu0 0.0
    %110 = vmatprep.subr.mxu0 0.0
    %111 = vmatpush1.msra.mxu0 0.0
    %112 = vmatprep.subr.mxu0 0.0
    %113 = vmatpush1.msra.mxu0 0.0
    %114 = vmatprep.subr.mxu0 0.0
    %115 = vmatpush1.msra.mxu0 0.0
    %116 = vmatprep.subr.mxu0 0.0
    %117 = vmatpush1.msra.mxu0 0.0
    %118 = vmatprep.subr.mxu0 0.0
    %119 = vmatpush1.msra.mxu0 0.0
    %120 = vmatprep.subr.mxu0 0.0
    %121 = vmatpush1.msra.mxu0 0.0
    %122 = vmatprep.subr.mxu0 0.0
    %123 = vmatpush1.msra.mxu0 0.0
    %124 = vmatprep.subr.mxu0 0.0
    %125 = vmatpush1.msra.mxu0 0.0
    %126 = vmatprep.subr.mxu0 0.0
    %127 = vmatpush1.msra.mxu0 0.0
    %128 = vmatprep.subr.mxu0 0.0
    %129 = vmatpush1.msra.mxu0 0.0
    %130 = vmatprep.subr.mxu0 0.0
    %131 = vmatpush1.msra.mxu0 0.0
    %132 = vmatprep.subr.mxu0 0.0
    %133 = vmatpush1.msra.mxu0 0.0
    %134 = vmatprep.subr.mxu0 0.0
    %135 = vmatpush1.msra.mxu0 0.0
    %136 = vmatprep.subr.mxu0 0.0
    %137 = vmatpush1.msra.mxu0 0.0
    %138 = vmatprep.subr.mxu0 0.0
    %139 = vmatpush1.msra.mxu0 0.0
    %140 = vmatprep.subr.mxu0 0.0
    %141 = vmatpush1.msra.mxu0 0.0
    %142 = vmatprep.subr.mxu0 0.0
    %143 = vmatpush1.msra.mxu0 0.0
    %144 = vmatprep.mubr.f32.mxu0 0.0
    %145 = vmatmul.mubr.f32.gmra.mrb[0].mxu0 %v75
    %v146 = vpop.f32.mrb[0].mxu0
    %v147 = vadd.f32 0.0, %v146
    %v148 = vpop.f32.mrb[0].mxu0
    %149 = vmatprep.mubr.f32.mxu0 0.0
    %150 = vmatmul.mubr.f32.gmra.mrb[0].mxu0 %v78
    %v151 = vpop.f32.mrb[0].mxu0
    %v152 = vadd.f32 0.0, %v151
    %v153 = vpop.f32.mrb[0].mxu0
    %154 = vdwg.mxu0
    %v156 = vsel %vm73, %v57, 0
    %v159 = vsel %vm73, %v58, 0
    %161 = vmatprep.subr.mxu0 0.0
    %162 = vmatpush1.msra.mxu0 %v71
    %163 = vmatprep.subr.mxu0 0.0
    %164 = vmatpush1.msra.mxu0 %v72
    %165 = vmatprep.subr.mxu0 0.0
    %166 = vmatpush1.msra.mxu0 0.0
    %167 = vmatprep.subr.mxu0 0.0
    %168 = vmatpush1.msra.mxu0 0.0
    %169 = vmatprep.subr.mxu0 0.0
    %170 = vmatpush1.msra.mxu0 0.0
    %171 = vmatprep.subr.mxu0 0.0
    %172 = vmatpush1.msra.mxu0 0.0
    %173 = vmatprep.subr.mxu0 0.0
    %174 = vmatpush1.msra.mxu0 0.0
    %175 = vmatprep.subr.mxu0 0.0
    %176 = vmatpush1.msra.mxu0 0.0
    %177 = vmatprep.subr.mxu0 0.0
    %178 = vmatpush1.msra.mxu0 0.0
    %179 = vmatprep.subr.mxu0 0.0
    %180 = vmatpush1.msra.mxu0 0.0
    %181 = vmatprep.subr.mxu0 0.0
    %182 = vmatpush1.msra.mxu0 0.0
    %183 = vmatprep.subr.mxu0 0.0
    %184 = vmatpush1.msra.mxu0 0.0
    %185 = vmatprep.subr.mxu0 0.0
    %186 = vmatpush1.msra.mxu0 0.0
    %187 = vmatprep.subr.mxu0 0.0
    %188 = vmatpush1.msra.mxu0 0.0
    %189 = vmatprep.subr.mxu0 0.0
    %190 = vmatpush1.msra.mxu0 0.0
    %191 = vmatprep.subr.mxu0 0.0
    %192 = vmatpush1.msra.mxu0 0.0
    %193 = vmatprep.subr.mxu0 0.0
    %194 = vmatpush1.msra.mxu0 0.0
    %195 = vmatprep.subr.mxu0 0.0
    %196 = vmatpush1.msra.mxu0 0.0
    %197 = vmatprep.subr.mxu0 0.0
    %198 = vmatpush1.msra.mxu0 0.0
    %199 = vmatprep.subr.mxu0 0.0
    %200 = vmatpush1.msra.mxu0 0.0
    %201 = vmatprep.subr.mxu0 0.0
    %202 = vmatpush1.msra.mxu0 0.0
    %203 = vmatprep.subr.mxu0 0.0
    %204 = vmatpush1.msra.mxu0 0.0
    %205 = vmatprep.subr.mxu0 0.0
    %206 = vmatpush1.msra.mxu0 0.0
    %207 = vmatprep.subr.mxu0 0.0
    %208 = vmatpush1.msra.mxu0 0.0
    %209 = vmatprep.subr.mxu0 0.0
    %210 = vmatpush1.msra.mxu0 0.0
    %211 = vmatprep.subr.mxu0 0.0
    %212 = vmatpush1.msra.mxu0 0.0
    %213 = vmatprep.subr.mxu0 0.0
    %214 = vmatpush1.msra.mxu0 0.0
    %215 = vmatprep.subr.mxu0 0.0
    %216 = vmatpush1.msra.mxu0 0.0
    %217 = vmatprep.subr.mxu0 0.0
    %218 = vmatpush1.msra.mxu0 0.0
    %219 = vmatprep.subr.mxu0 0.0
    %220 = vmatpush1.msra.mxu0 0.0
    %221 = vmatprep.subr.mxu0 0.0
    %222 = vmatpush1.msra.mxu0 0.0
    %223 = vmatprep.subr.mxu0 0.0
    %224 = vmatpush1.msra.mxu0 0.0
    %225 = vmatprep.mubr.f32.mxu0 0.0
    %226 = vmatmul.mubr.f32.gmra.mrb[0].mxu0 %v156
    %v227 = vpop.f32.mrb[0].mxu0
    %v228 = vadd.f32 0.0, %v227
    %v229 = vpop.f32.mrb[0].mxu0
    %230 = vmatprep.mubr.f32.mxu0 0.0
    %231 = vmatmul.mubr.f32.gmra.mrb[0].mxu0 %v159
    %v232 = vpop.f32.mrb[0].mxu0
    %v233 = vadd.f32 0.0, %v232
    %v234 = vpop.f32.mrb[0].mxu0
    %235 = vdwg.mxu0
    %v237 = vsel %vm73, %v59, 0
    %v240 = vsel %vm73, %v60, 0
    %242 = vmatprep.subr.mxu0 0.0
    %243 = vmatpush1.msra.mxu0 %v71
    %244 = vmatprep.subr.mxu0 0.0
    %245 = vmatpush1.msra.mxu0 %v72
    %246 = vmatprep.subr.mxu0 0.0
    %247 = vmatpush1.msra.mxu0 0.0
    %248 = vmatprep.subr.mxu0 0.0
    %249 = vmatpush1.msra.mxu0 0.0
    %250 = vmatprep.subr.mxu0 0.0
    %251 = vmatpush1.msra.mxu0 0.0
    %252 = vmatprep.subr.mxu0 0.0
    %253 = vmatpush1.msra.mxu0 0.0
    %254 = vmatprep.subr.mxu0 0.0
    %255 = vmatpush1.msra.mxu0 0.0
    %256 = vmatprep.subr.mxu0 0.0
    %257 = vmatpush1.msra.mxu0 0.0
    %258 = vmatprep.subr.mxu0 0.0
    %259 = vmatpush1.msra.mxu0 0.0
    %260 = vmatprep.subr.mxu0 0.0
    %261 = vmatpush1.msra.mxu0 0.0
    %262 = vmatprep.subr.mxu0 0.0
    %263 = vmatpush1.msra.mxu0 0.0
    %264 = vmatprep.subr.mxu0 0.0
    %265 = vmatpush1.msra.mxu0 0.0
    %266 = vmatprep.subr.mxu0 0.0
    %267 = vmatpush1.msra.mxu0 0.0
    %268 = vmatprep.subr.mxu0 0.0
    %269 = vmatpush1.msra.mxu0 0.0
    %270 = vmatprep.subr.mxu0 0.0
    %271 = vmatpush1.msra.mxu0 0.0
    %272 = vmatprep.subr.mxu0 0.0
    %273 = vmatpush1.msra.mxu0 0.0
    %274 = vmatprep.subr.mxu0 0.0
    %275 = vmatpush1.msra.mxu0 0.0
    %276 = vmatprep.subr.mxu0 0.0
    %277 = vmatpush1.msra.mxu0 0.0
    %278 = vmatprep.subr.mxu0 0.0
    %279 = vmatpush1.msra.mxu0 0.0
    %280 = vmatprep.subr.mxu0 0.0
    %281 = vmatpush1.msra.mxu0 0.0
    %282 = vmatprep.subr.mxu0 0.0
    %283 = vmatpush1.msra.mxu0 0.0
    %284 = vmatprep.subr.mxu0 0.0
    %285 = vmatpush1.msra.mxu0 0.0
    %286 = vmatprep.subr.mxu0 0.0
    %287 = vmatpush1.msra.mxu0 0.0
    %288 = vmatprep.subr.mxu0 0.0
    %289 = vmatpush1.msra.mxu0 0.0
    %290 = vmatprep.subr.mxu0 0.0
    %291 = vmatpush1.msra.mxu0 0.0
    %292 = vmatprep.subr.mxu0 0.0
    %293 = vmatpush1.msra.mxu0 0.0
    %294 = vmatprep.subr.mxu0 0.0
    %295 = vmatpush1.msra.mxu0 0.0
    %296 = vmatprep.subr.mxu0 0.0
    %297 = vmatpush1.msra.mxu0 0.0
    %298 = vmatprep.subr.mxu0 0.0
    %299 = vmatpush1.msra.mxu0 0.0
    %300 = vmatprep.subr.mxu0 0.0
    %301 = vmatpush1.msra.mxu0 0.0
    %302 = vmatprep.subr.mxu0 0.0
    %303 = vmatpush1.msra.mxu0 0.0
    %304 = vmatprep.subr.mxu0 0.0
    %305 = vmatpush1.msra.mxu0 0.0
    %306 = vmatprep.mubr.f32.mxu0 0.0
    %307 = vmatmul.mubr.f32.gmra.mrb[0].mxu0 %v237
    %v308 = vpop.f32.mrb[0].mxu0
    %v309 = vadd.f32 0.0, %v308
    %v310 = vpop.f32.mrb[0].mxu0
    %311 = vmatprep.mubr.f32.mxu0 0.0
    %312 = vmatmul.mubr.f32.gmra.mrb[0].mxu0 %v240
    %v313 = vpop.f32.mrb[0].mxu0
    %v314 = vadd.f32 0.0, %v313
    %v315 = vpop.f32.mrb[0].mxu0
    %316 = vdwg.mxu0
    %v318 = vsel %vm73, %v61, 0
    %v321 = vsel %vm73, %v62, 0
    %323 = vmatprep.subr.mxu0 0.0
    %324 = vmatpush1.msra.mxu0 %v71
    %325 = vmatprep.subr.mxu0 0.0
    %326 = vmatpush1.msra.mxu0 %v72
    %327 = vmatprep.subr.mxu0 0.0
    %328 = vmatpush1.msra.mxu0 0.0
    %329 = vmatprep.subr.mxu0 0.0
    %330 = vmatpush1.msra.mxu0 0.0
    %331 = vmatprep.subr.mxu0 0.0
    %332 = vmatpush1.msra.mxu0 0.0
    %333 = vmatprep.subr.mxu0 0.0
    %334 = vmatpush1.msra.mxu0 0.0
    %335 = vmatprep.subr.mxu0 0.0
    %336 = vmatpush1.msra.mxu0 0.0
    %337 = vmatprep.subr.mxu0 0.0
    %338 = vmatpush1.msra.mxu0 0.0
    %339 = vmatprep.subr.mxu0 0.0
    %340 = vmatpush1.msra.mxu0 0.0
    %341 = vmatprep.subr.mxu0 0.0
    %342 = vmatpush1.msra.mxu0 0.0
    %343 = vmatprep.subr.mxu0 0.0
    %344 = vmatpush1.msra.mxu0 0.0
    %345 = vmatprep.subr.mxu0 0.0
    %346 = vmatpush1.msra.mxu0 0.0
    %347 = vmatprep.subr.mxu0 0.0
    %348 = vmatpush1.msra.mxu0 0.0
    %349 = vmatprep.subr.mxu0 0.0
    %350 = vmatpush1.msra.mxu0 0.0
    %351 = vmatprep.subr.mxu0 0.0
    %352 = vmatpush1.msra.mxu0 0.0
    %353 = vmatprep.subr.mxu0 0.0
    %354 = vmatpush1.msra.mxu0 0.0
    %355 = vmatprep.subr.mxu0 0.0
    %356 = vmatpush1.msra.mxu0 0.0
    %357 = vmatprep.subr.mxu0 0.0
    %358 = vmatpush1.msra.mxu0 0.0
    %359 = vmatprep.subr.mxu0 0.0
    %360 = vmatpush1.msra.mxu0 0.0
    %361 = vmatprep.subr.mxu0 0.0
    %362 = vmatpush1.msra.mxu0 0.0
    %363 = vmatprep.subr.mxu0 0.0
    %364 = vmatpush1.msra.mxu0 0.0
    %365 = vmatprep.subr.mxu0 0.0
    %366 = vmatpush1.msra.mxu0 0.0
    %367 = vmatprep.subr.mxu0 0.0
    %368 = vmatpush1.msra.mxu0 0.0
    %369 = vmatprep.subr.mxu0 0.0
    %370 = vmatpush1.msra.mxu0 0.0
    %371 = vmatprep.subr.mxu0 0.0
    %372 = vmatpush1.msra.mxu0 0.0
    %373 = vmatprep.subr.mxu0 0.0
    %374 = vmatpush1.msra.mxu0 0.0
    %375 = vmatprep.subr.mxu0 0.0
    %376 = vmatpush1.msra.mxu0 0.0
    %377 = vmatprep.subr.mxu0 0.0
    %378 = vmatpush1.msra.mxu0 0.0
    %379 = vmatprep.subr.mxu0 0.0
    %380 = vmatpush1.msra.mxu0 0.0
    %381 = vmatprep.subr.mxu0 0.0
    %382 = vmatpush1.msra.mxu0 0.0
    %383 = vmatprep.subr.mxu0 0.0
    %384 = vmatpush1.msra.mxu0 0.0
    %385 = vmatprep.subr.mxu0 0.0
    %386 = vmatpush1.msra.mxu0 0.0
    %387 = vmatprep.mubr.f32.mxu0 0.0
    %388 = vmatmul.mubr.f32.gmra.mrb[0].mxu0 %v318
    %v389 = vpop.f32.mrb[0].mxu0
    %v390 = vadd.f32 0.0, %v389
    %v391 = vpop.f32.mrb[0].mxu0
    %392 = vmatprep.mubr.f32.mxu0 0.0
    %393 = vmatmul.mubr.f32.gmra.mrb[0].mxu0 %v321
    %v394 = vpop.f32.mrb[0].mxu0
    %v395 = vadd.f32 0.0, %v394
    %v396 = vpop.f32.mrb[0].mxu0
    %397 = vdwg.mxu0
    %v399 = vsel %vm73, %v63, 0
    %v402 = vsel %vm73, %v64, 0
    %404 = vmatprep.subr.mxu0 0.0
    %405 = vmatpush1.msra.mxu0 %v71
    %406 = vmatprep.subr.mxu0 0.0
    %407 = vmatpush1.msra.mxu0 %v72
    %408 = vmatprep.subr.mxu0 0.0
    %409 = vmatpush1.msra.mxu0 0.0
    %410 = vmatprep.subr.mxu0 0.0
    %411 = vmatpush1.msra.mxu0 0.0
    %412 = vmatprep.subr.mxu0 0.0
    %413 = vmatpush1.msra.mxu0 0.0
    %414 = vmatprep.subr.mxu0 0.0
    %415 = vmatpush1.msra.mxu0 0.0
    %416 = vmatprep.subr.mxu0 0.0
    %417 = vmatpush1.msra.mxu0 0.0
    %418 = vmatprep.subr.mxu0 0.0
    %419 = vmatpush1.msra.mxu0 0.0
    %420 = vmatprep.subr.mxu0 0.0
    %421 = vmatpush1.msra.mxu0 0.0
    %422 = vmatprep.subr.mxu0 0.0
    %423 = vmatpush1.msra.mxu0 0.0
    %424 = vmatprep.subr.mxu0 0.0
    %425 = vmatpush1.msra.mxu0 0.0
    %426 = vmatprep.subr.mxu0 0.0
    %427 = vmatpush1.msra.mxu0 0.0
    %428 = vmatprep.subr.mxu0 0.0
    %429 = vmatpush1.msra.mxu0 0.0
    %430 = vmatprep.subr.mxu0 0.0
    %431 = vmatpush1.msra.mxu0 0.0
    %432 = vmatprep.subr.mxu0 0.0
    %433 = vmatpush1.msra.mxu0 0.0
    %434 = vmatprep.subr.mxu0 0.0
    %435 = vmatpush1.msra.mxu0 0.0
    %436 = vmatprep.subr.mxu0 0.0
    %437 = vmatpush1.msra.mxu0 0.0
    %438 = vmatprep.subr.mxu0 0.0
    %439 = vmatpush1.msra.mxu0 0.0
    %440 = vmatprep.subr.mxu0 0.0
    %441 = vmatpush1.msra.mxu0 0.0
    %442 = vmatprep.subr.mxu0 0.0
    %443 = vmatpush1.msra.mxu0 0.0
    %444 = vmatprep.subr.mxu0 0.0
    %445 = vmatpush1.msra.mxu0 0.0
    %446 = vmatprep.subr.mxu0 0.0
    %447 = vmatpush1.msra.mxu0 0.0
    %448 = vmatprep.subr.mxu0 0.0
    %449 = vmatpush1.msra.mxu0 0.0
    %450 = vmatprep.subr.mxu0 0.0
    %451 = vmatpush1.msra.mxu0 0.0
    %452 = vmatprep.subr.mxu0 0.0
    %453 = vmatpush1.msra.mxu0 0.0
    %454 = vmatprep.subr.mxu0 0.0
    %455 = vmatpush1.msra.mxu0 0.0
    %456 = vmatprep.subr.mxu0 0.0
    %457 = vmatpush1.msra.mxu0 0.0
    %458 = vmatprep.subr.mxu0 0.0
    %459 = vmatpush1.msra.mxu0 0.0
    %460 = vmatprep.subr.mxu0 0.0
    %461 = vmatpush1.msra.mxu0 0.0
    %462 = vmatprep.subr.mxu0 0.0
    %463 = vmatpush1.msra.mxu0 0.0
    %464 = vmatprep.subr.mxu0 0.0
    %465 = vmatpush1.msra.mxu0 0.0
    %466 = vmatprep.subr.mxu0 0.0
    %467 = vmatpush1.msra.mxu0 0.0
    %468 = vmatprep.mubr.f32.mxu0 0.0
    %469 = vmatmul.mubr.f32.gmra.mrb[0].mxu0 %v399
    %v470 = vpop.f32.mrb[0].mxu0
    %v471 = vadd.f32 0.0, %v470
    %v472 = vpop.f32.mrb[0].mxu0
    %473 = vmatprep.mubr.f32.mxu0 0.0
    %474 = vmatmul.mubr.f32.gmra.mrb[0].mxu0 %v402
    %v475 = vpop.f32.mrb[0].mxu0
    %v476 = vadd.f32 0.0, %v475
    %v477 = vpop.f32.mrb[0].mxu0
    %478 = vdwg.mxu0
    %v480 = vsel %vm73, %v65, 0
    %v483 = vsel %vm73, %v66, 0
    %485 = vmatprep.subr.mxu0 0.0
    %486 = vmatpush1.msra.mxu0 %v71
    %487 = vmatprep.subr.mxu0 0.0
    %488 = vmatpush1.msra.mxu0 %v72
    %489 = vmatprep.subr.mxu0 0.0
    %490 = vmatpush1.msra.mxu0 0.0
    %491 = vmatprep.subr.mxu0 0.0
    %492 = vmatpush1.msra.mxu0 0.0
    %493 = vmatprep.subr.mxu0 0.0
    %494 = vmatpush1.msra.mxu0 0.0
    %495 = vmatprep.subr.mxu0 0.0
    %496 = vmatpush1.msra.mxu0 0.0
    %497 = vmatprep.subr.mxu0 0.0
    %498 = vmatpush1.msra.mxu0 0.0
    %499 = vmatprep.subr.mxu0 0.0
    %500 = vmatpush1.msra.mxu0 0.0
    %501 = vmatprep.subr.mxu0 0.0
    %502 = vmatpush1.msra.mxu0 0.0
    %503 = vmatprep.subr.mxu0 0.0
    %504 = vmatpush1.msra.mxu0 0.0
    %505 = vmatprep.subr.mxu0 0.0
    %506 = vmatpush1.msra.mxu0 0.0
    %507 = vmatprep.subr.mxu0 0.0
    %508 = vmatpush1.msra.mxu0 0.0
    %509 = vmatprep.subr.mxu0 0.0
    %510 = vmatpush1.msra.mxu0 0.0
    %511 = vmatprep.subr.mxu0 0.0
    %512 = vmatpush1.msra.mxu0 0.0
    %513 = vmatprep.subr.mxu0 0.0
    %514 = vmatpush1.msra.mxu0 0.0
    %515 = vmatprep.subr.mxu0 0.0
    %516 = vmatpush1.msra.mxu0 0.0
    %517 = vmatprep.subr.mxu0 0.0
    %518 = vmatpush1.msra.mxu0 0.0
    %519 = vmatprep.subr.mxu0 0.0
    %520 = vmatpush1.msra.mxu0 0.0
    %521 = vmatprep.subr.mxu0 0.0
    %522 = vmatpush1.msra.mxu0 0.0
    %523 = vmatprep.subr.mxu0 0.0
    %524 = vmatpush1.msra.mxu0 0.0
    %525 = vmatprep.subr.mxu0 0.0
    %526 = vmatpush1.msra.mxu0 0.0
    %527 = vmatprep.subr.mxu0 0.0
    %528 = vmatpush1.msra.mxu0 0.0
    %529 = vmatprep.subr.mxu0 0.0
    %530 = vmatpush1.msra.mxu0 0.0
    %531 = vmatprep.subr.mxu0 0.0
    %532 = vmatpush1.msra.mxu0 0.0
    %533 = vmatprep.subr.mxu0 0.0
    %534 = vmatpush1.msra.mxu0 0.0
    %535 = vmatprep.subr.mxu0 0.0
    %536 = vmatpush1.msra.mxu0 0.0
    %537 = vmatprep.subr.mxu0 0.0
    %538 = vmatpush1.msra.mxu0 0.0
    %539 = vmatprep.subr.mxu0 0.0
    %540 = vmatpush1.msra.mxu0 0.0
    %541 = vmatprep.subr.mxu0 0.0
    %542 = vmatpush1.msra.mxu0 0.0
    %543 = vmatprep.subr.mxu0 0.0
    %544 = vmatpush1.msra.mxu0 0.0
    %545 = vmatprep.subr.mxu0 0.0
    %546 = vmatpush1.msra.mxu0 0.0
    %547 = vmatprep.subr.mxu0 0.0
    %548 = vmatpush1.msra.mxu0 0.0
    %549 = vmatprep.mubr.f32.mxu0 0.0
    %550 = vmatmul.mubr.f32.gmra.mrb[0].mxu0 %v480
    %v551 = vpop.f32.mrb[0].mxu0
    %v552 = vadd.f32 0.0, %v551
    %v553 = vpop.f32.mrb[0].mxu0
    %554 = vmatprep.mubr.f32.mxu0 0.0
    %555 = vmatmul.mubr.f32.gmra.mrb[0].mxu0 %v483
    %v556 = vpop.f32.mrb[0].mxu0
    %v557 = vadd.f32 0.0, %v556
    %v558 = vpop.f32.mrb[0].mxu0
    %559 = vdwg.mxu0
    %v561 = vsel %vm73, %v67, 0
    %v564 = vsel %vm73, %v68, 0
    %566 = vmatprep.subr.mxu0 0.0
    %567 = vmatpush1.msra.mxu0 %v71
    %568 = vmatprep.subr.mxu0 0.0
    %569 = vmatpush1.msra.mxu0 %v72
    %570 = vmatprep.subr.mxu0 0.0
    %571 = vmatpush1.msra.mxu0 0.0
    %572 = vmatprep.subr.mxu0 0.0
    %573 = vmatpush1.msra.mxu0 0.0
    %574 = vmatprep.subr.mxu0 0.0
    %575 = vmatpush1.msra.mxu0 0.0
    %576 = vmatprep.subr.mxu0 0.0
    %577 = vmatpush1.msra.mxu0 0.0
    %578 = vmatprep.subr.mxu0 0.0
    %579 = vmatpush1.msra.mxu0 0.0
    %580 = vmatprep.subr.mxu0 0.0
    %581 = vmatpush1.msra.mxu0 0.0
    %582 = vmatprep.subr.mxu0 0.0
    %583 = vmatpush1.msra.mxu0 0.0
    %584 = vmatprep.subr.mxu0 0.0
    %585 = vmatpush1.msra.mxu0 0.0
    %586 = vmatprep.subr.mxu0 0.0
    %587 = vmatpush1.msra.mxu0 0.0
    %588 = vmatprep.subr.mxu0 0.0
    %589 = vmatpush1.msra.mxu0 0.0
    %590 = vmatprep.subr.mxu0 0.0
    %591 = vmatpush1.msra.mxu0 0.0
    %592 = vmatprep.subr.mxu0 0.0
    %593 = vmatpush1.msra.mxu0 0.0
    %594 = vmatprep.subr.mxu0 0.0
    %595 = vmatpush1.msra.mxu0 0.0
    %596 = vmatprep.subr.mxu0 0.0
    %597 = vmatpush1.msra.mxu0 0.0
    %598 = vmatprep.subr.mxu0 0.0
    %599 = vmatpush1.msra.mxu0 0.0
    %600 = vmatprep.subr.mxu0 0.0
    %601 = vmatpush1.msra.mxu0 0.0
    %602 = vmatprep.subr.mxu0 0.0
    %603 = vmatpush1.msra.mxu0 0.0
    %604 = vmatprep.subr.mxu0 0.0
    %605 = vmatpush1.msra.mxu0 0.0
    %606 = vmatprep.subr.mxu0 0.0
    %607 = vmatpush1.msra.mxu0 0.0
    %608 = vmatprep.subr.mxu0 0.0
    %609 = vmatpush1.msra.mxu0 0.0
    %610 = vmatprep.subr.mxu0 0.0
    %611 = vmatpush1.msra.mxu0 0.0
    %612 = vmatprep.subr.mxu0 0.0
    %613 = vmatpush1.msra.mxu0 0.0
    %614 = vmatprep.subr.mxu0 0.0
    %615 = vmatpush1.msra.mxu0 0.0
    %616 = vmatprep.subr.mxu0 0.0
    %617 = vmatpush1.msra.mxu0 0.0
    %618 = vmatprep.subr.mxu0 0.0
    %619 = vmatpush1.msra.mxu0 0.0
    %620 = vmatprep.subr.mxu0 0.0
    %621 = vmatpush1.msra.mxu0 0.0
    %622 = vmatprep.subr.mxu0 0.0
    %623 = vmatpush1.msra.mxu0 0.0
    %624 = vmatprep.subr.mxu0 0.0
    %625 = vmatpush1.msra.mxu0 0.0
    %626 = vmatprep.subr.mxu0 0.0
    %627 = vmatpush1.msra.mxu0 0.0
    %628 = vmatprep.subr.mxu0 0.0
    %629 = vmatpush1.msra.mxu0 0.0
    %630 = vmatprep.mubr.f32.mxu0 0.0
    %631 = vmatmul.mubr.f32.gmra.mrb[0].mxu0 %v561
    %v632 = vpop.f32.mrb[0].mxu0
    %v633 = vadd.f32 0.0, %v632
    %v634 = vpop.f32.mrb[0].mxu0
    %635 = vmatprep.mubr.f32.mxu0 0.0
    %636 = vmatmul.mubr.f32.gmra.mrb[0].mxu0 %v564
    %v637 = vpop.f32.mrb[0].mxu0
    %v638 = vadd.f32 0.0, %v637
    %v639 = vpop.f32.mrb[0].mxu0
    %640 = vdwg.mxu0
    %v642 = vsel %vm73, %v69, 0
    %v645 = vsel %vm73, %v70, 0
    %647 = vmatprep.subr.mxu0 0.0
    %648 = vmatpush1.msra.mxu0 %v71
    %649 = vmatprep.subr.mxu0 0.0
    %650 = vmatpush1.msra.mxu0 %v72
    %651 = vmatprep.subr.mxu0 0.0
    %652 = vmatpush1.msra.mxu0 0.0
    %653 = vmatprep.subr.mxu0 0.0
    %654 = vmatpush1.msra.mxu0 0.0
    %655 = vmatprep.subr.mxu0 0.0
    %656 = vmatpush1.msra.mxu0 0.0
    %657 = vmatprep.subr.mxu0 0.0
    %658 = vmatpush1.msra.mxu0 0.0
    %659 = vmatprep.subr.mxu0 0.0
    %660 = vmatpush1.msra.mxu0 0.0
    %661 = vmatprep.subr.mxu0 0.0
    %662 = vmatpush1.msra.mxu0 0.0
    %663 = vmatprep.subr.mxu0 0.0
    %664 = vmatpush1.msra.mxu0 0.0
    %665 = vmatprep.subr.mxu0 0.0
    %666 = vmatpush1.msra.mxu0 0.0
    %667 = vmatprep.subr.mxu0 0.0
    %668 = vmatpush1.msra.mxu0 0.0
    %669 = vmatprep.subr.mxu0 0.0
    %670 = vmatpush1.msra.mxu0 0.0
    %671 = vmatprep.subr.mxu0 0.0
    %672 = vmatpush1.msra.mxu0 0.0
    %673 = vmatprep.subr.mxu0 0.0
    %674 = vmatpush1.msra.mxu0 0.0
    %675 = vmatprep.subr.mxu0 0.0
    %676 = vmatpush1.msra.mxu0 0.0
    %677 = vmatprep.subr.mxu0 0.0
    %678 = vmatpush1.msra.mxu0 0.0
    %679 = vmatprep.subr.mxu0 0.0
    %680 = vmatpush1.msra.mxu0 0.0
    %681 = vmatprep.subr.mxu0 0.0
    %682 = vmatpush1.msra.mxu0 0.0
    %683 = vmatprep.subr.mxu0 0.0
    %684 = vmatpush1.msra.mxu0 0.0
    %685 = vmatprep.subr.mxu0 0.0
    %686 = vmatpush1.msra.mxu0 0.0
    %687 = vmatprep.subr.mxu0 0.0
    %688 = vmatpush1.msra.mxu0 0.0
    %689 = vmatprep.subr.mxu0 0.0
    %690 = vmatpush1.msra.mxu0 0.0
    %691 = vmatprep.subr.mxu0 0.0
    %692 = vmatpush1.msra.mxu0 0.0
    %693 = vmatprep.subr.mxu0 0.0
    %694 = vmatpush1.msra.mxu0 0.0
    %695 = vmatprep.subr.mxu0 0.0
    %696 = vmatpush1.msra.mxu0 0.0
    %697 = vmatprep.subr.mxu0 0.0
    %698 = vmatpush1.msra.mxu0 0.0
    %699 = vmatprep.subr.mxu0 0.0
    %700 = vmatpush1.msra.mxu0 0.0
    %701 = vmatprep.subr.mxu0 0.0
    %702 = vmatpush1.msra.mxu0 0.0
    %703 = vmatprep.subr.mxu0 0.0
    %704 = vmatpush1.msra.mxu0 0.0
    %705 = vmatprep.subr.mxu0 0.0
    %706 = vmatpush1.msra.mxu0 0.0
    %707 = vmatprep.subr.mxu0 0.0
    %708 = vmatpush1.msra.mxu0 0.0
    %709 = vmatprep.subr.mxu0 0.0
    %710 = vmatpush1.msra.mxu0 0.0
    %711 = vmatprep.mubr.f32.mxu0 0.0
    %712 = vmatmul.mubr.f32.gmra.mrb[0].mxu0 %v642
    %v713 = vpop.f32.mrb[0].mxu0
    %v714 = vadd.f32 0.0, %v713
    %v715 = vpop.f32.mrb[0].mxu0
    %716 = vmatprep.mubr.f32.mxu0 0.0
    %717 = vmatmul.mubr.f32.gmra.mrb[0].mxu0 %v645
    %v718 = vpop.f32.mrb[0].mxu0
    %v719 = vadd.f32 0.0, %v718
    %v720 = vpop.f32.mrb[0].mxu0
    %721 = vdwg.mxu0
    %v722 = vld [vmem:[#allocation4] sm:$0xff]
    %v723 = vld [vmem:[#allocation4 + $0x8] sm:$0xf]
    %v725 = vsel %vm73, %v722, 0
    %v728 = vsel %vm73, %v723, 0
    %730 = vmatprep.subr.mxu0 0.0
    %731 = vmatpush1.msra.mxu0 %v147
    %732 = vmatprep.subr.mxu0 0.0
    %733 = vmatpush1.msra.mxu0 %v152
    %734 = vmatprep.subr.mxu0 0.0
    %735 = vmatpush1.msra.mxu0 0.0
    %736 = vmatprep.subr.mxu0 0.0
    %737 = vmatpush1.msra.mxu0 0.0
    %738 = vmatprep.subr.mxu0 0.0
    %739 = vmatpush1.msra.mxu0 0.0
    %740 = vmatprep.subr.mxu0 0.0
    %741 = vmatpush1.msra.mxu0 0.0
    %742 = vmatprep.subr.mxu0 0.0
    %743 = vmatpush1.msra.mxu0 0.0
    %744 = vmatprep.subr.mxu0 0.0
    %745 = vmatpush1.msra.mxu0 0.0
    %746 = vmatprep.subr.mxu0 0.0
    %747 = vmatpush1.msra.mxu0 0.0
    %748 = vmatprep.subr.mxu0 0.0
    %749 = vmatpush1.msra.mxu0 0.0
    %750 = vmatprep.subr.mxu0 0.0
    %751 = vmatpush1.msra.mxu0 0.0
    %752 = vmatprep.subr.mxu0 0.0
    %753 = vmatpush1.msra.mxu0 0.0
    %754 = vmatprep.subr.mxu0 0.0
    %755 = vmatpush1.msra.mxu0 0.0
    %756 = vmatprep.subr.mxu0 0.0
    %757 = vmatpush1.msra.mxu0 0.0
    %758 = vmatprep.subr.mxu0 0.0
    %759 = vmatpush1.msra.mxu0 0.0
    %760 = vmatprep.subr.mxu0 0.0
    %761 = vmatpush1.msra.mxu0 0.0
    %762 = vmatprep.subr.mxu0 0.0
    %763 = vmatpush1.msra.mxu0 0.0
    %764 = vmatprep.subr.mxu0 0.0
    %765 = vmatpush1.msra.mxu0 0.0
    %766 = vmatprep.subr.mxu0 0.0
    %767 = vmatpush1.msra.mxu0 0.0
    %768 = vmatprep.subr.mxu0 0.0
    %769 = vmatpush1.msra.mxu0 0.0
    %770 = vmatprep.subr.mxu0 0.0
    %771 = vmatpush1.msra.mxu0 0.0
    %772 = vmatprep.subr.mxu0 0.0
    %773 = vmatpush1.msra.mxu0 0.0
    %774 = vmatprep.subr.mxu0 0.0
    %775 = vmatpush1.msra.mxu0 0.0
    %776 = vmatprep.subr.mxu0 0.0
    %777 = vmatpush1.msra.mxu0 0.0
    %778 = vmatprep.subr.mxu0 0.0
    %779 = vmatpush1.msra.mxu0 0.0
    %780 = vmatprep.subr.mxu0 0.0
    %781 = vmatpush1.msra.mxu0 0.0
    %782 = vmatprep.subr.mxu0 0.0
    %783 = vmatpush1.msra.mxu0 0.0
    %784 = vmatprep.subr.mxu0 0.0
    %785 = vmatpush1.msra.mxu0 0.0
    %786 = vmatprep.subr.mxu0 0.0
    %787 = vmatpush1.msra.mxu0 0.0
    %788 = vmatprep.subr.mxu0 0.0
    %789 = vmatpush1.msra.mxu0 0.0
    %790 = vmatprep.subr.mxu0 0.0
    %791 = vmatpush1.msra.mxu0 0.0
    %792 = vmatprep.subr.mxu0 0.0
    %793 = vmatpush1.msra.mxu0 0.0
    %794 = vmatprep.mubr.f32.mxu0 0.0
    %795 = vmatmul.mubr.f32.gmra.mrb[0].mxu0 %v725
    %v796 = vpop.f32.mrb[0].mxu0
    %v797 = vadd.f32 0.0, %v796
    %v798 = vpop.f32.mrb[0].mxu0
    %799 = vmatprep.mubr.f32.mxu0 0.0
    %800 = vmatmul.mubr.f32.gmra.mrb[0].mxu0 %v728
    %v801 = vpop.f32.mrb[0].mxu0
    %v802 = vadd.f32 0.0, %v801
    %v803 = vpop.f32.mrb[0].mxu0
    %804 = vdwg.mxu0
    %805 = vmatprep.subr.mxu0 0.0
    %806 = vmatpush1.msra.mxu0 %v228
    %807 = vmatprep.subr.mxu0 0.0
    %808 = vmatpush1.msra.mxu0 %v233
    %809 = vmatprep.subr.mxu0 0.0
    %810 = vmatpush1.msra.mxu0 0.0
    %811 = vmatprep.subr.mxu0 0.0
    %812 = vmatpush1.msra.mxu0 0.0
    %813 = vmatprep.subr.mxu0 0.0
    %814 = vmatpush1.msra.mxu0 0.0
    %815 = vmatprep.subr.mxu0 0.0
    %816 = vmatpush1.msra.mxu0 0.0
    %817 = vmatprep.subr.mxu0 0.0
    %818 = vmatpush1.msra.mxu0 0.0
    %819 = vmatprep.subr.mxu0 0.0
    %820 = vmatpush1.msra.mxu0 0.0
    %821 = vmatprep.subr.mxu0 0.0
    %822 = vmatpush1.msra.mxu0 0.0
    %823 = vmatprep.subr.mxu0 0.0
    %824 = vmatpush1.msra.mxu0 0.0
    %825 = vmatprep.subr.mxu0 0.0
    %826 = vmatpush1.msra.mxu0 0.0
    %827 = vmatprep.subr.mxu0 0.0
    %828 = vmatpush1.msra.mxu0 0.0
    %829 = vmatprep.subr.mxu0 0.0
    %830 = vmatpush1.msra.mxu0 0.0
    %831 = vmatprep.subr.mxu0 0.0
    %832 = vmatpush1.msra.mxu0 0.0
    %833 = vmatprep.subr.mxu0 0.0
    %834 = vmatpush1.msra.mxu0 0.0
    %835 = vmatprep.subr.mxu0 0.0
    %836 = vmatpush1.msra.mxu0 0.0
    %837 = vmatprep.subr.mxu0 0.0
    %838 = vmatpush1.msra.mxu0 0.0
    %839 = vmatprep.subr.mxu0 0.0
    %840 = vmatpush1.msra.mxu0 0.0
    %841 = vmatprep.subr.mxu0 0.0
    %842 = vmatpush1.msra.mxu0 0.0
    %843 = vmatprep.subr.mxu0 0.0
    %844 = vmatpush1.msra.mxu0 0.0
    %845 = vmatprep.subr.mxu0 0.0
    %846 = vmatpush1.msra.mxu0 0.0
    %847 = vmatprep.subr.mxu0 0.0
    %848 = vmatpush1.msra.mxu0 0.0
    %849 = vmatprep.subr.mxu0 0.0
    %850 = vmatpush1.msra.mxu0 0.0
    %851 = vmatprep.subr.mxu0 0.0
    %852 = vmatpush1.msra.mxu0 0.0
    %853 = vmatprep.subr.mxu0 0.0
    %854 = vmatpush1.msra.mxu0 0.0
    %855 = vmatprep.subr.mxu0 0.0
    %856 = vmatpush1.msra.mxu0 0.0
    %857 = vmatprep.subr.mxu0 0.0
    %858 = vmatpush1.msra.mxu0 0.0
    %859 = vmatprep.subr.mxu0 0.0
    %860 = vmatpush1.msra.mxu0 0.0
    %861 = vmatprep.subr.mxu0 0.0
    %862 = vmatpush1.msra.mxu0 0.0
    %863 = vmatprep.subr.mxu0 0.0
    %864 = vmatpush1.msra.mxu0 0.0
    %865 = vmatprep.subr.mxu0 0.0
    %866 = vmatpush1.msra.mxu0 0.0
    %867 = vmatprep.subr.mxu0 0.0
    %868 = vmatpush1.msra.mxu0 0.0
    %869 = vmatprep.mubr.f32.mxu0 0.0
    %870 = vmatmul.mubr.f32.gmra.mrb[0].mxu0 %v725
    %v871 = vpop.f32.mrb[0].mxu0
    %v872 = vadd.f32 0.0, %v871
    %v873 = vpop.f32.mrb[0].mxu0
    %874 = vmatprep.mubr.f32.mxu0 0.0
    %875 = vmatmul.mubr.f32.gmra.mrb[0].mxu0 %v728
    %v876 = vpop.f32.mrb[0].mxu0
    %v877 = vadd.f32 0.0, %v876
    %v878 = vpop.f32.mrb[0].mxu0
    %879 = vdwg.mxu0
    %880 = vmatprep.subr.mxu0 0.0
    %881 = vmatpush1.msra.mxu0 %v309
    %882 = vmatprep.subr.mxu0 0.0
    %883 = vmatpush1.msra.mxu0 %v314
    %884 = vmatprep.subr.mxu0 0.0
    %885 = vmatpush1.msra.mxu0 0.0
    %886 = vmatprep.subr.mxu0 0.0
    %887 = vmatpush1.msra.mxu0 0.0
    %888 = vmatprep.subr.mxu0 0.0
    %889 = vmatpush1.msra.mxu0 0.0
    %890 = vmatprep.subr.mxu0 0.0
    %891 = vmatpush1.msra.mxu0 0.0
    %892 = vmatprep.subr.mxu0 0.0
    %893 = vmatpush1.msra.mxu0 0.0
    %894 = vmatprep.subr.mxu0 0.0
    %895 = vmatpush1.msra.mxu0 0.0
    %896 = vmatprep.subr.mxu0 0.0
    %897 = vmatpush1.msra.mxu0 0.0
    %898 = vmatprep.subr.mxu0 0.0
    %899 = vmatpush1.msra.mxu0 0.0
    %900 = vmatprep.subr.mxu0 0.0
    %901 = vmatpush1.msra.mxu0 0.0
    %902 = vmatprep.subr.mxu0 0.0
    %903 = vmatpush1.msra.mxu0 0.0
    %904 = vmatprep.subr.mxu0 0.0
    %905 = vmatpush1.msra.mxu0 0.0
    %906 = vmatprep.subr.mxu0 0.0
    %907 = vmatpush1.msra.mxu0 0.0
    %908 = vmatprep.subr.mxu0 0.0
    %909 = vmatpush1.msra.mxu0 0.0
    %910 = vmatprep.subr.mxu0 0.0
    %911 = vmatpush1.msra.mxu0 0.0
    %912 = vmatprep.subr.mxu0 0.0
    %913 = vmatpush1.msra.mxu0 0.0
    %914 = vmatprep.subr.mxu0 0.0
    %915 = vmatpush1.msra.mxu0 0.0
    %916 = vmatprep.subr.mxu0 0.0
    %917 = vmatpush1.msra.mxu0 0.0
    %918 = vmatprep.subr.mxu0 0.0
    %919 = vmatpush1.msra.mxu0 0.0
    %920 = vmatprep.subr.mxu0 0.0
    %921 = vmatpush1.msra.mxu0 0.0
    %922 = vmatprep.subr.mxu0 0.0
    %923 = vmatpush1.msra.mxu0 0.0
    %924 = vmatprep.subr.mxu0 0.0
    %925 = vmatpush1.msra.mxu0 0.0
    %926 = vmatprep.subr.mxu0 0.0
    %927 = vmatpush1.msra.mxu0 0.0
    %928 = vmatprep.subr.mxu0 0.0
    %929 = vmatpush1.msra.mxu0 0.0
    %930 = vmatprep.subr.mxu0 0.0
    %931 = vmatpush1.msra.mxu0 0.0
    %932 = vmatprep.subr.mxu0 0.0
    %933 = vmatpush1.msra.mxu0 0.0
    %934 = vmatprep.subr.mxu0 0.0
    %935 = vmatpush1.msra.mxu0 0.0
    %936 = vmatprep.subr.mxu0 0.0
    %937 = vmatpush1.msra.mxu0 0.0
    %938 = vmatprep.subr.mxu0 0.0
    %939 = vmatpush1.msra.mxu0 0.0
    %940 = vmatprep.subr.mxu0 0.0
    %941 = vmatpush1.msra.mxu0 0.0
    %942 = vmatprep.subr.mxu0 0.0
    %943 = vmatpush1.msra.mxu0 0.0
    %944 = vmatprep.mubr.f32.mxu0 0.0
    %945 = vmatmul.mubr.f32.gmra.mrb[0].mxu0 %v725
    %v946 = vpop.f32.mrb[0].mxu0
    %v947 = vadd.f32 0.0, %v946
    %v948 = vpop.f32.mrb[0].mxu0
    %949 = vmatprep.mubr.f32.mxu0 0.0
    %950 = vmatmul.mubr.f32.gmra.mrb[0].mxu0 %v728
    %v951 = vpop.f32.mrb[0].mxu0
    %v952 = vadd.f32 0.0, %v951
    %v953 = vpop.f32.mrb[0].mxu0
    %954 = vdwg.mxu0
    %955 = vmatprep.subr.mxu0 0.0
    %956 = vmatpush1.msra.mxu0 %v390
    %957 = vmatprep.subr.mxu0 0.0
    %958 = vmatpush1.msra.mxu0 %v395
    %959 = vmatprep.subr.mxu0 0.0
    %960 = vmatpush1.msra.mxu0 0.0
    %961 = vmatprep.subr.mxu0 0.0
    %962 = vmatpush1.msra.mxu0 0.0
    %963 = vmatprep.subr.mxu0 0.0
    %964 = vmatpush1.msra.mxu0 0.0
    %965 = vmatprep.subr.mxu0 0.0
    %966 = vmatpush1.msra.mxu0 0.0
    %967 = vmatprep.subr.mxu0 0.0
    %968 = vmatpush1.msra.mxu0 0.0
    %969 = vmatprep.subr.mxu0 0.0
    %970 = vmatpush1.msra.mxu0 0.0
    %971 = vmatprep.subr.mxu0 0.0
    %972 = vmatpush1.msra.mxu0 0.0
    %973 = vmatprep.subr.mxu0 0.0
    %974 = vmatpush1.msra.mxu0 0.0
    %975 = vmatprep.subr.mxu0 0.0
    %976 = vmatpush1.msra.mxu0 0.0
    %977 = vmatprep.subr.mxu0 0.0
    %978 = vmatpush1.msra.mxu0 0.0
    %979 = vmatprep.subr.mxu0 0.0
    %980 = vmatpush1.msra.mxu0 0.0
    %981 = vmatprep.subr.mxu0 0.0
    %982 = vmatpush1.msra.mxu0 0.0
    %983 = vmatprep.subr.mxu0 0.0
    %984 = vmatpush1.msra.mxu0 0.0
    %985 = vmatprep.subr.mxu0 0.0
    %986 = vmatpush1.msra.mxu0 0.0
    %987 = vmatprep.subr.mxu0 0.0
    %988 = vmatpush1.msra.mxu0 0.0
    %989 = vmatprep.subr.mxu0 0.0
    %990 = vmatpush1.msra.mxu0 0.0
    %991 = vmatprep.subr.mxu0 0.0
    %992 = vmatpush1.msra.mxu0 0.0
    %993 = vmatprep.subr.mxu0 0.0
    %994 = vmatpush1.msra.mxu0 0.0
    %995 = vmatprep.subr.mxu0 0.0
    %996 = vmatpush1.msra.mxu0 0.0
    %997 = vmatprep.subr.mxu0 0.0
    %998 = vmatpush1.msra.mxu0 0.0
    %999 = vmatprep.subr.mxu0 0.0
    %1000 = vmatpush1.msra.mxu0 0.0
    %1001 = vmatprep.subr.mxu0 0.0
    %1002 = vmatpush1.msra.mxu0 0.0
    %1003 = vmatprep.subr.mxu0 0.0
    %1004 = vmatpush1.msra.mxu0 0.0
    %1005 = vmatprep.subr.mxu0 0.0
    %1006 = vmatpush1.msra.mxu0 0.0
    %1007 = vmatprep.subr.mxu0 0.0
    %1008 = vmatpush1.msra.mxu0 0.0
    %1009 = vmatprep.subr.mxu0 0.0
    %1010 = vmatpush1.msra.mxu0 0.0
    %1011 = vmatprep.subr.mxu0 0.0
    %1012 = vmatpush1.msra.mxu0 0.0
    %1013 = vmatprep.subr.mxu0 0.0
    %1014 = vmatpush1.msra.mxu0 0.0
    %1015 = vmatprep.subr.mxu0 0.0
    %1016 = vmatpush1.msra.mxu0 0.0
    %1017 = vmatprep.subr.mxu0 0.0
    %1018 = vmatpush1.msra.mxu0 0.0
    %1019 = vmatprep.mubr.f32.mxu0 0.0
    %1020 = vmatmul.mubr.f32.gmra.mrb[0].mxu0 %v725
    %v1021 = vpop.f32.mrb[0].mxu0
    %v1022 = vadd.f32 0.0, %v1021
    %v1023 = vpop.f32.mrb[0].mxu0
    %1024 = vmatprep.mubr.f32.mxu0 0.0
    %1025 = vmatmul.mubr.f32.gmra.mrb[0].mxu0 %v728
    %v1026 = vpop.f32.mrb[0].mxu0
    %v1027 = vadd.f32 0.0, %v1026
    %v1028 = vpop.f32.mrb[0].mxu0
    %1029 = vdwg.mxu0
    %1030 = vmatprep.subr.mxu0 0.0
    %1031 = vmatpush1.msra.mxu0 %v471
    %1032 = vmatprep.subr.mxu0 0.0
    %1033 = vmatpush1.msra.mxu0 %v476
    %1034 = vmatprep.subr.mxu0 0.0
    %1035 = vmatpush1.msra.mxu0 0.0
    %1036 = vmatprep.subr.mxu0 0.0
    %1037 = vmatpush1.msra.mxu0 0.0
    %1038 = vmatprep.subr.mxu0 0.0
    %1039 = vmatpush1.msra.mxu0 0.0
    %1040 = vmatprep.subr.mxu0 0.0
    %1041 = vmatpush1.msra.mxu0 0.0
    %1042 = vmatprep.subr.mxu0 0.0
    %1043 = vmatpush1.msra.mxu0 0.0
    %1044 = vmatprep.subr.mxu0 0.0
    %1045 = vmatpush1.msra.mxu0 0.0
    %1046 = vmatprep.subr.mxu0 0.0
    %1047 = vmatpush1.msra.mxu0 0.0
    %1048 = vmatprep.subr.mxu0 0.0
    %1049 = vmatpush1.msra.mxu0 0.0
    %1050 = vmatprep.subr.mxu0 0.0
    %1051 = vmatpush1.msra.mxu0 0.0
    %1052 = vmatprep.subr.mxu0 0.0
    %1053 = vmatpush1.msra.mxu0 0.0
    %1054 = vmatprep.subr.mxu0 0.0
    %1055 = vmatpush1.msra.mxu0 0.0
    %1056 = vmatprep.subr.mxu0 0.0
    %1057 = vmatpush1.msra.mxu0 0.0
    %1058 = vmatprep.subr.mxu0 0.0
    %1059 = vmatpush1.msra.mxu0 0.0
    %1060 = vmatprep.subr.mxu0 0.0
    %1061 = vmatpush1.msra.mxu0 0.0
    %1062 = vmatprep.subr.mxu0 0.0
    %1063 = vmatpush1.msra.mxu0 0.0
    %1064 = vmatprep.subr.mxu0 0.0
    %1065 = vmatpush1.msra.mxu0 0.0
    %1066 = vmatprep.subr.mxu0 0.0
    %1067 = vmatpush1.msra.mxu0 0.0
    %1068 = vmatprep.subr.mxu0 0.0
    %1069 = vmatpush1.msra.mxu0 0.0
    %1070 = vmatprep.subr.mxu0 0.0
    %1071 = vmatpush1.msra.mxu0 0.0
    %1072 = vmatprep.subr.mxu0 0.0
    %1073 = vmatpush1.msra.mxu0 0.0
    %1074 = vmatprep.subr.mxu0 0.0
    %1075 = vmatpush1.msra.mxu0 0.0
    %1076 = vmatprep.subr.mxu0 0.0
    %1077 = vmatpush1.msra.mxu0 0.0
    %1078 = vmatprep.subr.mxu0 0.0
    %1079 = vmatpush1.msra.mxu0 0.0
    %1080 = vmatprep.subr.mxu0 0.0
    %1081 = vmatpush1.msra.mxu0 0.0
    %1082 = vmatprep.subr.mxu0 0.0
    %1083 = vmatpush1.msra.mxu0 0.0
    %1084 = vmatprep.subr.mxu0 0.0
    %1085 = vmatpush1.msra.mxu0 0.0
    %1086 = vmatprep.subr.mxu0 0.0
    %1087 = vmatpush1.msra.mxu0 0.0
    %1088 = vmatprep.subr.mxu0 0.0
    %1089 = vmatpush1.msra.mxu0 0.0
    %1090 = vmatprep.subr.mxu0 0.0
    %1091 = vmatpush1.msra.mxu0 0.0
    %1092 = vmatprep.subr.mxu0 0.0
    %1093 = vmatpush1.msra.mxu0 0.0
    %1094 = vmatprep.mubr.f32.mxu0 0.0
    %1095 = vmatmul.mubr.f32.gmra.mrb[0].mxu0 %v725
    %v1096 = vpop.f32.mrb[0].mxu0
    %v1097 = vadd.f32 0.0, %v1096
    %v1098 = vpop.f32.mrb[0].mxu0
    %1099 = vmatprep.mubr.f32.mxu0 0.0
    %1100 = vmatmul.mubr.f32.gmra.mrb[0].mxu0 %v728
    %v1101 = vpop.f32.mrb[0].mxu0
    %v1102 = vadd.f32 0.0, %v1101
    %v1103 = vpop.f32.mrb[0].mxu0
    %1104 = vdwg.mxu0
    %1105 = vmatprep.subr.mxu0 0.0
    %1106 = vmatpush1.msra.mxu0 %v552
    %1107 = vmatprep.subr.mxu0 0.0
    %1108 = vmatpush1.msra.mxu0 %v557
    %1109 = vmatprep.subr.mxu0 0.0
    %1110 = vmatpush1.msra.mxu0 0.0
    %1111 = vmatprep.subr.mxu0 0.0
    %1112 = vmatpush1.msra.mxu0 0.0
    %1113 = vmatprep.subr.mxu0 0.0
    %1114 = vmatpush1.msra.mxu0 0.0
    %1115 = vmatprep.subr.mxu0 0.0
    %1116 = vmatpush1.msra.mxu0 0.0
    %1117 = vmatprep.subr.mxu0 0.0
    %1118 = vmatpush1.msra.mxu0 0.0
    %1119 = vmatprep.subr.mxu0 0.0
    %1120 = vmatpush1.msra.mxu0 0.0
    %1121 = vmatprep.subr.mxu0 0.0
    %1122 = vmatpush1.msra.mxu0 0.0
    %1123 = vmatprep.subr.mxu0 0.0
    %1124 = vmatpush1.msra.mxu0 0.0
    %1125 = vmatprep.subr.mxu0 0.0
    %1126 = vmatpush1.msra.mxu0 0.0
    %1127 = vmatprep.subr.mxu0 0.0
    %1128 = vmatpush1.msra.mxu0 0.0
    %1129 = vmatprep.subr.mxu0 0.0
    %1130 = vmatpush1.msra.mxu0 0.0
    %1131 = vmatprep.subr.mxu0 0.0
    %1132 = vmatpush1.msra.mxu0 0.0
    %1133 = vmatprep.subr.mxu0 0.0
    %1134 = vmatpush1.msra.mxu0 0.0
    %1135 = vmatprep.subr.mxu0 0.0
    %1136 = vmatpush1.msra.mxu0 0.0
    %1137 = vmatprep.subr.mxu0 0.0
    %1138 = vmatpush1.msra.mxu0 0.0
    %1139 = vmatprep.subr.mxu0 0.0
    %1140 = vmatpush1.msra.mxu0 0.0
    %1141 = vmatprep.subr.mxu0 0.0
    %1142 = vmatpush1.msra.mxu0 0.0
    %1143 = vmatprep.subr.mxu0 0.0
    %1144 = vmatpush1.msra.mxu0 0.0
    %1145 = vmatprep.subr.mxu0 0.0
    %1146 = vmatpush1.msra.mxu0 0.0
    %1147 = vmatprep.subr.mxu0 0.0
    %1148 = vmatpush1.msra.mxu0 0.0
    %1149 = vmatprep.subr.mxu0 0.0
    %1150 = vmatpush1.msra.mxu0 0.0
    %1151 = vmatprep.subr.mxu0 0.0
    %1152 = vmatpush1.msra.mxu0 0.0
    %1153 = vmatprep.subr.mxu0 0.0
    %1154 = vmatpush1.msra.mxu0 0.0
    %1155 = vmatprep.subr.mxu0 0.0
    %1156 = vmatpush1.msra.mxu0 0.0
    %1157 = vmatprep.subr.mxu0 0.0
    %1158 = vmatpush1.msra.mxu0 0.0
    %1159 = vmatprep.subr.mxu0 0.0
    %1160 = vmatpush1.msra.mxu0 0.0
    %1161 = vmatprep.subr.mxu0 0.0
    %1162 = vmatpush1.msra.mxu0 0.0
    %1163 = vmatprep.subr.mxu0 0.0
    %1164 = vmatpush1.msra.mxu0 0.0
    %1165 = vmatprep.subr.mxu0 0.0
    %1166 = vmatpush1.msra.mxu0 0.0
    %1167 = vmatprep.subr.mxu0 0.0
    %1168 = vmatpush1.msra.mxu0 0.0
    %1169 = vmatprep.mubr.f32.mxu0 0.0
    %1170 = vmatmul.mubr.f32.gmra.mrb[0].mxu0 %v725
    %v1171 = vpop.f32.mrb[0].mxu0
    %v1172 = vadd.f32 0.0, %v1171
    %v1173 = vpop.f32.mrb[0].mxu0
    %1174 = vmatprep.mubr.f32.mxu0 0.0
    %1175 = vmatmul.mubr.f32.gmra.mrb[0].mxu0 %v728
    %v1176 = vpop.f32.mrb[0].mxu0
    %v1177 = vadd.f32 0.0, %v1176
    %v1178 = vpop.f32.mrb[0].mxu0
    %1179 = vdwg.mxu0
    %1180 = vmatprep.subr.mxu0 0.0
    %1181 = vmatpush1.msra.mxu0 %v633
    %1182 = vmatprep.subr.mxu0 0.0
    %1183 = vmatpush1.msra.mxu0 %v638
    %1184 = vmatprep.subr.mxu0 0.0
    %1185 = vmatpush1.msra.mxu0 0.0
    %1186 = vmatprep.subr.mxu0 0.0
    %1187 = vmatpush1.msra.mxu0 0.0
    %1188 = vmatprep.subr.mxu0 0.0
    %1189 = vmatpush1.msra.mxu0 0.0
    %1190 = vmatprep.subr.mxu0 0.0
    %1191 = vmatpush1.msra.mxu0 0.0
    %1192 = vmatprep.subr.mxu0 0.0
    %1193 = vmatpush1.msra.mxu0 0.0
    %1194 = vmatprep.subr.mxu0 0.0
    %1195 = vmatpush1.msra.mxu0 0.0
    %1196 = vmatprep.subr.mxu0 0.0
    %1197 = vmatpush1.msra.mxu0 0.0
    %1198 = vmatprep.subr.mxu0 0.0
    %1199 = vmatpush1.msra.mxu0 0.0
    %1200 = vmatprep.subr.mxu0 0.0
    %1201 = vmatpush1.msra.mxu0 0.0
    %1202 = vmatprep.subr.mxu0 0.0
    %1203 = vmatpush1.msra.mxu0 0.0
    %1204 = vmatprep.subr.mxu0 0.0
    %1205 = vmatpush1.msra.mxu0 0.0
    %1206 = vmatprep.subr.mxu0 0.0
    %1207 = vmatpush1.msra.mxu0 0.0
    %1208 = vmatprep.subr.mxu0 0.0
    %1209 = vmatpush1.msra.mxu0 0.0
    %1210 = vmatprep.subr.mxu0 0.0
    %1211 = vmatpush1.msra.mxu0 0.0
    %1212 = vmatprep.subr.mxu0 0.0
    %1213 = vmatpush1.msra.mxu0 0.0
    %1214 = vmatprep.subr.mxu0 0.0
    %1215 = vmatpush1.msra.mxu0 0.0
    %1216 = vmatprep.subr.mxu0 0.0
    %1217 = vmatpush1.msra.mxu0 0.0
    %1218 = vmatprep.subr.mxu0 0.0
    %1219 = vmatpush1.msra.mxu0 0.0
    %1220 = vmatprep.subr.mxu0 0.0
    %1221 = vmatpush1.msra.mxu0 0.0
    %1222 = vmatprep.subr.mxu0 0.0
    %1223 = vmatpush1.msra.mxu0 0.0
    %1224 = vmatprep.subr.mxu0 0.0
    %1225 = vmatpush1.msra.mxu0 0.0
    %1226 = vmatprep.subr.mxu0 0.0
    %1227 = vmatpush1.msra.mxu0 0.0
    %1228 = vmatprep.subr.mxu0 0.0
    %1229 = vmatpush1.msra.mxu0 0.0
    %1230 = vmatprep.subr.mxu0 0.0
    %1231 = vmatpush1.msra.mxu0 0.0
    %1232 = vmatprep.subr.mxu0 0.0
    %1233 = vmatpush1.msra.mxu0 0.0
    %1234 = vmatprep.subr.mxu0 0.0
    %1235 = vmatpush1.msra.mxu0 0.0
    %1236 = vmatprep.subr.mxu0 0.0
    %1237 = vmatpush1.msra.mxu0 0.0
    %1238 = vmatprep.subr.mxu0 0.0
    %1239 = vmatpush1.msra.mxu0 0.0
    %1240 = vmatprep.subr.mxu0 0.0
    %1241 = vmatpush1.msra.mxu0 0.0
    %1242 = vmatprep.subr.mxu0 0.0
    %1243 = vmatpush1.msra.mxu0 0.0
    %1244 = vmatprep.mubr.f32.mxu0 0.0
    %1245 = vmatmul.mubr.f32.gmra.mrb[0].mxu0 %v725
    %v1246 = vpop.f32.mrb[0].mxu0
    %v1247 = vadd.f32 0.0, %v1246
    %v1248 = vpop.f32.mrb[0].mxu0
    %1249 = vmatprep.mubr.f32.mxu0 0.0
    %1250 = vmatmul.mubr.f32.gmra.mrb[0].mxu0 %v728
    %v1251 = vpop.f32.mrb[0].mxu0
    %v1252 = vadd.f32 0.0, %v1251
    %v1253 = vpop.f32.mrb[0].mxu0
    %1254 = vdwg.mxu0
    %1255 = vmatprep.subr.mxu0 0.0
    %1256 = vmatpush1.msra.mxu0 %v714
    %1257 = vmatprep.subr.mxu0 0.0
    %1258 = vmatpush1.msra.mxu0 %v719
    %1259 = vmatprep.subr.mxu0 0.0
    %1260 = vmatpush1.msra.mxu0 0.0
    %1261 = vmatprep.subr.mxu0 0.0
    %1262 = vmatpush1.msra.mxu0 0.0
    %1263 = vmatprep.subr.mxu0 0.0
    %1264 = vmatpush1.msra.mxu0 0.0
    %1265 = vmatprep.subr.mxu0 0.0
    %1266 = vmatpush1.msra.mxu0 0.0
    %1267 = vmatprep.subr.mxu0 0.0
    %1268 = vmatpush1.msra.mxu0 0.0
    %1269 = vmatprep.subr.mxu0 0.0
    %1270 = vmatpush1.msra.mxu0 0.0
    %1271 = vmatprep.subr.mxu0 0.0
    %1272 = vmatpush1.msra.mxu0 0.0
    %1273 = vmatprep.subr.mxu0 0.0
    %1274 = vmatpush1.msra.mxu0 0.0
    %1275 = vmatprep.subr.mxu0 0.0
    %1276 = vmatpush1.msra.mxu0 0.0
    %1277 = vmatprep.subr.mxu0 0.0
    %1278 = vmatpush1.msra.mxu0 0.0
    %1279 = vmatprep.subr.mxu0 0.0
    %1280 = vmatpush1.msra.mxu0 0.0
    %1281 = vmatprep.subr.mxu0 0.0
    %1282 = vmatpush1.msra.mxu0 0.0
    %1283 = vmatprep.subr.mxu0 0.0
    %1284 = vmatpush1.msra.mxu0 0.0
    %1285 = vmatprep.subr.mxu0 0.0
    %1286 = vmatpush1.msra.mxu0 0.0
    %1287 = vmatprep.subr.mxu0 0.0
    %1288 = vmatpush1.msra.mxu0 0.0
    %1289 = vmatprep.subr.mxu0 0.0
    %1290 = vmatpush1.msra.mxu0 0.0
    %1291 = vmatprep.subr.mxu0 0.0
    %1292 = vmatpush1.msra.mxu0 0.0
    %1293 = vmatprep.subr.mxu0 0.0
    %1294 = vmatpush1.msra.mxu0 0.0
    %1295 = vmatprep.subr.mxu0 0.0
    %1296 = vmatpush1.msra.mxu0 0.0
    %1297 = vmatprep.subr.mxu0 0.0
    %1298 = vmatpush1.msra.mxu0 0.0
    %1299 = vmatprep.subr.mxu0 0.0
    %1300 = vmatpush1.msra.mxu0 0.0
    %1301 = vmatprep.subr.mxu0 0.0
    %1302 = vmatpush1.msra.mxu0 0.0
    %1303 = vmatprep.subr.mxu0 0.0
    %1304 = vmatpush1.msra.mxu0 0.0
    %1305 = vmatprep.subr.mxu0 0.0
    %1306 = vmatpush1.msra.mxu0 0.0
    %1307 = vmatprep.subr.mxu0 0.0
    %1308 = vmatpush1.msra.mxu0 0.0
    %1309 = vmatprep.subr.mxu0 0.0
    %1310 = vmatpush1.msra.mxu0 0.0
    %1311 = vmatprep.subr.mxu0 0.0
    %1312 = vmatpush1.msra.mxu0 0.0
    %1313 = vmatprep.subr.mxu0 0.0
    %1314 = vmatpush1.msra.mxu0 0.0
    %1315 = vmatprep.subr.mxu0 0.0
    %1316 = vmatpush1.msra.mxu0 0.0
    %1317 = vmatprep.subr.mxu0 0.0
    %1318 = vmatpush1.msra.mxu0 0.0
    %1319 = vmatprep.mubr.f32.mxu0 0.0
    %1320 = vmatmul.mubr.f32.gmra.mrb[0].mxu0 %v725
    %v1321 = vpop.f32.mrb[0].mxu0
    %v1322 = vadd.f32 0.0, %v1321
    %v1323 = vpop.f32.mrb[0].mxu0
    %1324 = vmatprep.mubr.f32.mxu0 0.0
    %1325 = vmatmul.mubr.f32.gmra.mrb[0].mxu0 %v728
    %v1326 = vpop.f32.mrb[0].mxu0
    %v1327 = vadd.f32 0.0, %v1326
    %v1328 = vpop.f32.mrb[0].mxu0
    %1329 = vdwg.mxu0
    %vm1330 = vcmask 97280
    %1331 = vst.msk [vmem:[%s3] sm:$0xff] %vm1330, %v797
    %vm1332 = vcmask 93184
    %1333 = vst.msk [vmem:[%s3 + $0x8] sm:$0xf] %vm1332, %v802
    %1334 = vst.msk [vmem:[%s3 + $0x10] sm:$0xff] %vm1330, %v872
    %1335 = vst.msk [vmem:[%s3 + $0x18] sm:$0xf] %vm1332, %v877
    %1336 = vst.msk [vmem:[%s3 + $0x20] sm:$0xff] %vm1330, %v947
    %1337 = vst.msk [vmem:[%s3 + $0x28] sm:$0xf] %vm1332, %v952
    %1338 = vst.msk [vmem:[%s3 + $0x30] sm:$0xff] %vm1330, %v1022
    %1339 = vst.msk [vmem:[%s3 + $0x38] sm:$0xf] %vm1332, %v1027
    %1340 = vst.msk [vmem:[%s3 + $0x40] sm:$0xff] %vm1330, %v1097
    %1341 = vst.msk [vmem:[%s3 + $0x48] sm:$0xf] %vm1332, %v1102
    %1342 = vst.msk [vmem:[%s3 + $0x50] sm:$0xff] %vm1330, %v1172
    %1343 = vst.msk [vmem:[%s3 + $0x58] sm:$0xf] %vm1332, %v1177
    %1344 = vst.msk [vmem:[%s3 + $0x60] sm:$0xff] %vm1330, %v1247
    %1345 = vst.msk [vmem:[%s3 + $0x68] sm:$0xf] %vm1332, %v1252
    %1346 = vst.msk [vmem:[%s3 + $0x70] sm:$0xff] %vm1330, %v1322
    %1347 = vst.msk [vmem:[%s3 + $0x78] sm:$0xf] %vm1332, %v1327
    // Predicated region
    $region26: #{tpu_custom_call.1} parent=1 // pred_check
      _
    $region27: #{tpu_custom_call.1} parent=1 // pred_check_branch
      %1349 = sbr.rel (0) target = $region29
    $region28: #{tpu_custom_call.1} parent=1 // pred_region
      _
    $region29: #{tpu_custom_call.1} parent=1 // pred_fallthru
      _
    // Predicated region
    $region30: #{tpu_custom_call.1} parent=1 // pred_check
      _
    $region31: #{tpu_custom_call.1} parent=1 // pred_check_branch
      %1351 = sbr.rel (0) target = $region33
    $region32: #{tpu_custom_call.1} parent=1 // pred_region
      _
    $region33: #{tpu_custom_call.1} parent=1 // pred_fallthru
      _
    %1352 = vsyncpa [#allocation3], 1
    %1353 = vsyncpa [#allocation5], 1

</llo_original>
